<compile_context>
chip_gen: v7x
topology: tpu7x:2x2x1
jax: 0.10.0
libtpu: 0.0.40
codegen_flags: <defaults>
</compile_context>

<pallas_src>
import functools
import warnings

import jax
import jax.numpy as jnp
from jax.experimental import pallas as pl
from jax.experimental.pallas import tpu as pltpu

# Donation is a pure optimization; if XLA cannot alias in some configuration it
# only emits a cosmetic warning — keep the run output clean.
warnings.filterwarnings("ignore", message=".*donated buffers.*")


def _round_up(x, m):
    return ((x + m - 1) // m) * m


def _vmem_capacity_bytes():
    """Physical VMEM per core, with a conservative fallback (v7x per-TC)."""
    try:
        info = pltpu.get_tpu_info()
        for name in ("vmem_capacity_bytes", "vmem_size_bytes", "vmem_bytes"):
            v = getattr(info, name, None)
            if v:
                return int(v)
    except Exception:
        pass
    return 64 * 1024 * 1024


# ---------------------------------------------------------------------------
# Single-pass kernel: squeeze + excite + gate for bt whole images per step.
# ---------------------------------------------------------------------------
def gab_single_pass_kernel(x_ref, w1t_ref, b1_ref, w2t_ref, b2_ref, o_ref, *,
                           inv_hw):
    # Squeeze (first x read): f32-accumulated global mean over the true HW.
    means = jnp.sum(x_ref[...].astype(jnp.float32), axis=-1) * inv_hw  # (bt, C)

    # Excite: two 1x1 convs == dense layers (tiny next to the HBM traffic).
    z1 = jnp.dot(means, w1t_ref[...],
                 preferred_element_type=jnp.float32) + b1_ref[...]     # (bt, Cr)
    z1 = jnp.maximum(z1, 0.0)
    z2 = jnp.dot(z1, w2t_ref[...],
                 preferred_element_type=jnp.float32) + b2_ref[...]     # (bt, C)
    gate = jax.nn.sigmoid(z2)                                          # (bt, C)

    # Gate (second, independent x read — keeps vreg pressure low).
    x = x_ref[...]
    o_ref[...] = (x * gate[:, :, None].astype(x.dtype)).astype(o_ref.dtype)


# ---------------------------------------------------------------------------
# Two-pass fallback kernels (huge C*HW per image; hit first on v7x).
# ---------------------------------------------------------------------------
def gab_sum_kernel(x_ref, s_ref, *, hw, hw_chunk):
    j = pl.program_id(1)

    @pl.when(j == 0)
    def _():
        s_ref[...] = jnp.zeros_like(s_ref)

    x = x_ref[...].astype(jnp.float32)                          # (bt, C, hwc)
    # Mask the ragged spatial tail (out-of-bounds lanes hold garbage).
    lane = j * hw_chunk + jax.lax.broadcasted_iota(jnp.int32, x.shape, 2)
    x = jnp.where(lane < hw, x, 0.0)
    s_ref[...] += jnp.sum(x, axis=-1, keepdims=True)            # (bt, C, 1)


def gab_gate_kernel(x_ref, g_ref, o_ref):
    x = x_ref[...]                                              # (bt, C, hwc)
    o_ref[...] = (x * g_ref[...].astype(x.dtype)).astype(o_ref.dtype)


# ---------------------------------------------------------------------------
# Wrapper
# ---------------------------------------------------------------------------
def _gab_forward(x, w1, b1, w2, b2, *, vmem_budget_override=None):
    """x: (B, C, H, W); w1: (Cr, C); b1: (Cr,); w2: (C, Cr); b2: (C,)."""
    B, C, H, W = x.shape
    Cr = w1.shape[0]
    HW = H * W
    itemsize = jnp.dtype(x.dtype).itemsize

    x2 = x.reshape(B, C, HW)
    w1t = jnp.transpose(w1)            # (C, Cr)
    w2t = jnp.transpose(w2)            # (Cr, C)
    b1r = b1.reshape(1, Cr)
    b2r = b2.reshape(1, C)

    cap = _vmem_capacity_bytes()
    budget = (int(cap) * 3 // 4 if vmem_budget_override is None
              else int(vmem_budget_override))

    # VMEM footprint estimate uses the tiled (sublane 8 / lane 128) layout.
    subl = _round_up(C, 8)
    lanes = _round_up(HW, 128)
    per_image = subl * lanes * itemsize
    weight_bytes = (C * Cr * 2 + C + Cr) * 4 * 2   # f32, double-buffered

    if 4 * per_image + weight_bytes <= budget:
        # ---------------- single pass ----------------
        max_bt = max(1, (budget - weight_bytes) // (4 * per_image))
        bt = min(B, int(max_bt))
        if B >= 2:
            bt = min(bt, pl.cdiv(B, 2))     # grid >= 2: keep both v7x TCs busy
        grid_b = pl.cdiv(B, bt)
        needed = 4 * bt * per_image + weight_bytes + (2 << 20)
        vmem_limit = int(min(max(needed, 32 << 20), cap))

        out = pl.pallas_call(
            functools.partial(gab_single_pass_kernel, inv_hw=1.0 / float(HW)),
            out_shape=jax.ShapeDtypeStruct((B, C, HW), x.dtype),
            grid_spec=pltpu.PrefetchScalarGridSpec(
                num_scalar_prefetch=0,
                grid=(grid_b,),
                in_specs=[
                    pl.BlockSpec((bt, C, HW), lambda b: (b, 0, 0)),   # x
                    pl.BlockSpec((C, Cr), lambda b: (0, 0)),          # conv1 W^T
                    pl.BlockSpec((1, Cr), lambda b: (0, 0)),          # conv1 bias
                    pl.BlockSpec((Cr, C), lambda b: (0, 0)),          # conv2 W^T
                    pl.BlockSpec((1, C), lambda b: (0, 0)),           # conv2 bias
                ],
                out_specs=pl.BlockSpec((bt, C, HW), lambda b: (b, 0, 0)),
            ),
            compiler_params=pltpu.CompilerParams(
                dimension_semantics=("parallel",),
                vmem_limit_bytes=vmem_limit,
            ),
            input_output_aliases={0: 0},     # output overwrites x in place
        )(x2, w1t, b1r, w2t, b2r)
        return out.reshape(B, C, H, W)

    # ---------------- two-pass fallback ----------------
    hwc = max(128, (budget // (4 * subl * itemsize)) // 128 * 128)
    hwc = min(int(hwc), lanes)
    bt = 1
    grid_b = pl.cdiv(B, bt)
    grid_hw = pl.cdiv(HW, hwc)
    needed = 4 * bt * subl * hwc * itemsize + (4 << 20)
    vmem_limit = int(min(max(needed, 32 << 20), cap))

    # Pass 1: per-(b, c) sums over HW, tiled along HW (reduction axis last).
    sums = pl.pallas_call(
        functools.partial(gab_sum_kernel, hw=HW, hw_chunk=hwc),
        out_shape=jax.ShapeDtypeStruct((B, C, 1), jnp.float32),
        grid_spec=pltpu.PrefetchScalarGridSpec(
            num_scalar_prefetch=0,
            grid=(grid_b, grid_hw),
            in_specs=[pl.BlockSpec((bt, C, hwc), lambda b, j: (b, 0, j))],
            out_specs=pl.BlockSpec((bt, C, 1), lambda b, j: (b, 0, 0)),
        ),
        compiler_params=pltpu.CompilerParams(
            dimension_semantics=("parallel", "arbitrary"),
            vmem_limit_bytes=vmem_limit,
        ),
    )(x2)

    # Tiny excite on (B, C): negligible work, plain JAX.
    means = sums[:, :, 0] * (1.0 / float(HW))
    z1 = jnp.maximum(
        jnp.dot(means, w1t, preferred_element_type=jnp.float32) + b1r, 0.0)
    gate = jax.nn.sigmoid(
        jnp.dot(z1, w2t, preferred_element_type=jnp.float32) + b2r)
    gate = gate[:, :, None]                                   # (B, C, 1)

    # Pass 2: stream x in lane-dense tiles, multiply by the channel gate.
    out = pl.pallas_call(
        gab_gate_kernel,
        out_shape=jax.ShapeDtypeStruct((B, C, HW), x.dtype),
        grid_spec=pltpu.PrefetchScalarGridSpec(
            num_scalar_prefetch=0,
            grid=(grid_b, grid_hw),
            in_specs=[pl.BlockSpec((bt, C, hwc), lambda b, j: (b, 0, j)),
                      pl.BlockSpec((bt, C, 1), lambda b, j: (b, 0, 0))],
            out_specs=pl.BlockSpec((bt, C, hwc), lambda b, j: (b, 0, j)),
        ),
        compiler_params=pltpu.CompilerParams(
            dimension_semantics=("parallel", "parallel"),
            vmem_limit_bytes=vmem_limit,
        ),
        input_output_aliases={0: 0},
    )(x2, gate)
    return out.reshape(B, C, H, W)


gab_forward = jax.jit(_gab_forward, donate_argnums=(0,),
                      static_argnames=("vmem_budget_override",))


def gab_reference(x, w1, b1, w2, b2):
    """Pure-JAX reference mirroring the PyTorch forward."""
    z = jnp.mean(x, axis=(2, 3), keepdims=True)                       # (B,C,1,1)
    z1 = jnp.einsum("rc,bcij->brij", w1, z) + b1.reshape(1, -1, 1, 1)
    z1 = jnp.maximum(z1, 0.0)
    z2 = jnp.einsum("cr,brij->bcij", w2, z1) + b2.reshape(1, -1, 1, 1)
    return x * jax.nn.sigmoid(z2)


if __name__ == "__main__":
    # Module config: input_dim = 32, reduction = 4  ->  Cr = 8
    B, C = 2, 32
    reduction = 4
    Cr = C // reduction

    key = jax.random.PRNGKey(0)
    kx1, kx2, kx3, k1, kb1, k2, kb2 = jax.random.split(key, 7)

    # Deterministic synthetic parameters (1x1 convs == dense layers).
    w1 = jax.random.normal(k1, (Cr, C), dtype=jnp.float32) * 0.1
    b1 = jax.random.normal(kb1, (Cr,), dtype=jnp.float32) * 0.1
    w2 = jax.random.normal(k2, (C, Cr), dtype=jnp.float32) * 0.1
    b2 = jax.random.normal(kb2, (C,), dtype=jnp.float32) * 0.1

    ok = True

    # Case 1: lane-aligned spatial size (16x16 -> HW = 256), single-pass path.
    # (references are computed BEFORE the call because x is donated)
    x_a = jax.random.normal(kx1, (B, C, 16, 16), dtype=jnp.float32)
    ref_a = gab_reference(x_a, w1, b1, w2, b2)
    out_a = jax.block_until_ready(gab_forward(x_a, w1, b1, w2, b2))
    ok &= out_a.shape == ref_a.shape
    ok &= bool(jnp.allclose(out_a, ref_a, atol=1e-5, rtol=1e-5))

    # Case 2: non-aligned spatial size (14x14 -> HW = 196), ragged lane tail.
    x_b = jax.random.normal(kx2, (B, C, 14, 14), dtype=jnp.float32)
    ref_b = gab_reference(x_b, w1, b1, w2, b2)
    out_b = jax.block_until_ready(gab_forward(x_b, w1, b1, w2, b2))
    ok &= out_b.shape == ref_b.shape
    ok &= bool(jnp.allclose(out_b, ref_b, atol=1e-5, rtol=1e-5))

    # Case 3: force the two-pass fallback (tiny VMEM budget) to validate it.
    x_c = jax.random.normal(kx3, (B, C, 14, 14), dtype=jnp.float32)
    ref_c = gab_reference(x_c, w1, b1, w2, b2)
    out_c = jax.block_until_ready(
        gab_forward(x_c, w1, b1, w2, b2, vmem_budget_override=64 * 1024))
    ok &= out_c.shape == ref_c.shape
    ok &= bool(jnp.allclose(out_c, ref_c, atol=1e-5, rtol=1e-5))

    assert ok, "mismatch vs reference"
    print("KERNEL_OK")
</pallas_src>

<mosaic_0001>
module attributes {stable_mosaic.version = 11 : i64} {
  func.func @gab_single_pass_kernel(%arg0: i32, %arg1: memref<1x32x256xf32, #tpu.memory_space<vmem>>, %arg2: memref<32x8xf32, #tpu.memory_space<vmem>>, %arg3: memref<1x8xf32, #tpu.memory_space<vmem>>, %arg4: memref<8x32xf32, #tpu.memory_space<vmem>>, %arg5: memref<1x32xf32, #tpu.memory_space<vmem>>, %arg6: memref<1x32x256xf32, #tpu.memory_space<vmem>>) attributes {dimension_semantics = [#tpu.dimension_semantics<parallel>], iteration_bounds = array<i64: 2>, scalar_prefetch = 0 : i64, scratch_operands = 0 : i64, tpu.core_type = #tpu.core_type<tc>, window_params = [{transform_indices = @transform_0, window_bounds = array<i64: 1, 32, 256>}, {pipeline_mode = #tpu.pipeline_mode<synchronous>, transform_indices = @transform_1, window_bounds = array<i64: 32, 8>}, {pipeline_mode = #tpu.pipeline_mode<synchronous>, transform_indices = @transform_2, window_bounds = array<i64: 1, 8>}, {pipeline_mode = #tpu.pipeline_mode<synchronous>, transform_indices = @transform_3, window_bounds = array<i64: 8, 32>}, {pipeline_mode = #tpu.pipeline_mode<synchronous>, transform_indices = @transform_4, window_bounds = array<i64: 1, 32>}, {transform_indices = @transform_5, window_bounds = array<i64: 1, 32, 256>}]} {
    %c0 = arith.constant 0 : index
    %c0_0 = arith.constant 0 : index
    %c0_1 = arith.constant 0 : index
    %0 = vector.load %arg1[%c0, %c0_0, %c0_1] : memref<1x32x256xf32, #tpu.memory_space<vmem>>, vector<1x32x256xf32>
    %cst = arith.constant dense<0.000000e+00> : vector<1x32xf32>
    %1 = vector.multi_reduction <add>, %0, %cst [2] : vector<1x32x256xf32> to vector<1x32xf32>
    %cst_2 = arith.constant 3.906250e-03 : f32
    %2 = vector.broadcast %cst_2 : f32 to vector<1x32xf32>
    %3 = arith.mulf %1, %2 : vector<1x32xf32>
    %c0_3 = arith.constant 0 : index
    %c0_4 = arith.constant 0 : index
    %4 = vector.load %arg2[%c0_3, %c0_4] : memref<32x8xf32, #tpu.memory_space<vmem>>, vector<32x8xf32>
    %cst_5 = arith.constant dense<0.000000e+00> : vector<1x8xf32>
    %5 = tpu.matmul %3, %4, %cst_5 {dimension_numbers = #tpu.dot_dimension_numbers<[1], [0], [0], [1], [0, 0, 1, 1], [], []>} : vector<1x32xf32>, vector<32x8xf32>, vector<1x8xf32> -> vector<1x8xf32>
    %c0_6 = arith.constant 0 : index
    %c0_7 = arith.constant 0 : index
    %6 = vector.load %arg3[%c0_6, %c0_7] : memref<1x8xf32, #tpu.memory_space<vmem>>, vector<1x8xf32>
    %7 = arith.addf %5, %6 : vector<1x8xf32>
    %cst_8 = arith.constant 0.000000e+00 : f32
    %8 = vector.broadcast %cst_8 : f32 to vector<1x8xf32>
    %9 = arith.maximumf %7, %8 : vector<1x8xf32>
    %c0_9 = arith.constant 0 : index
    %c0_10 = arith.constant 0 : index
    %10 = vector.load %arg4[%c0_9, %c0_10] : memref<8x32xf32, #tpu.memory_space<vmem>>, vector<8x32xf32>
    %cst_11 = arith.constant dense<0.000000e+00> : vector<1x32xf32>
    %11 = tpu.matmul %9, %10, %cst_11 {dimension_numbers = #tpu.dot_dimension_numbers<[1], [0], [0], [1], [0, 0, 1, 1], [], []>} : vector<1x8xf32>, vector<8x32xf32>, vector<1x32xf32> -> vector<1x32xf32>
    %c0_12 = arith.constant 0 : index
    %c0_13 = arith.constant 0 : index
    %12 = vector.load %arg5[%c0_12, %c0_13] : memref<1x32xf32, #tpu.memory_space<vmem>>, vector<1x32xf32>
    %13 = arith.addf %11, %12 : vector<1x32xf32>
    %14 = arith.negf %13 : vector<1x32xf32>
    %15 = math.exp %14 : vector<1x32xf32>
    %cst_14 = arith.constant 1.000000e+00 : f32
    %16 = vector.broadcast %cst_14 : f32 to vector<1x32xf32>
    %17 = arith.addf %16, %15 : vector<1x32xf32>
    %18 = arith.divf %16, %17 : vector<1x32xf32>
    %c0_15 = arith.constant 0 : index
    %c0_16 = arith.constant 0 : index
    %c0_17 = arith.constant 0 : index
    %19 = vector.load %arg1[%c0_15, %c0_16, %c0_17] : memref<1x32x256xf32, #tpu.memory_space<vmem>>, vector<1x32x256xf32>
    %20 = vector.shape_cast %18 : vector<1x32xf32> to vector<1x32x1xf32>
    %21 = vector.broadcast %20 : vector<1x32x1xf32> to vector<1x32x256xf32>
    %22 = arith.mulf %19, %21 : vector<1x32x256xf32>
    %c0_18 = arith.constant 0 : index
    %c0_19 = arith.constant 0 : index
    %c0_20 = arith.constant 0 : index
    %23 = vector.load %arg6[%c0_18, %c0_19, %c0_20] : memref<1x32x256xf32, #tpu.memory_space<vmem>>, vector<1x32x256xf32>
    tpu.vector_store %arg6[%c0_18, %c0_19, %c0_20], %22 {strides = array<i32>} : memref<1x32x256xf32, #tpu.memory_space<vmem>>, vector<1x32x256xf32>,
    return
  }
  func.func @transform_0(%arg0: i32) -> (i32, i32, i32) {
    %c0_i32 = arith.constant 0 : i32
    %c0_i32_0 = arith.constant 0 : i32
    %c0_i32_1 = arith.constant 0 : i32
    return %arg0, %c0_i32, %c0_i32_0 : i32, i32, i32
  }
  func.func @transform_1(%arg0: i32) -> (i32, i32) {
    %c0_i32 = arith.constant 0 : i32
    %c0_i32_0 = arith.constant 0 : i32
    %c0_i32_1 = arith.constant 0 : i32
    return %c0_i32, %c0_i32_0 : i32, i32
  }
  func.func @transform_2(%arg0: i32) -> (i32, i32) {
    %c0_i32 = arith.constant 0 : i32
    %c0_i32_0 = arith.constant 0 : i32
    %c0_i32_1 = arith.constant 0 : i32
    return %c0_i32, %c0_i32_0 : i32, i32
  }
  func.func @transform_3(%arg0: i32) -> (i32, i32) {
    %c0_i32 = arith.constant 0 : i32
    %c0_i32_0 = arith.constant 0 : i32
    %c0_i32_1 = arith.constant 0 : i32
    return %c0_i32, %c0_i32_0 : i32, i32
  }
  func.func @transform_4(%arg0: i32) -> (i32, i32) {
    %c0_i32 = arith.constant 0 : i32
    %c0_i32_0 = arith.constant 0 : i32
    %c0_i32_1 = arith.constant 0 : i32
    return %c0_i32, %c0_i32_0 : i32, i32
  }
  func.func @transform_5(%arg0: i32) -> (i32, i32, i32) {
    %c0_i32 = arith.constant 0 : i32
    %c0_i32_0 = arith.constant 0 : i32
    %c0_i32_1 = arith.constant 0 : i32
    return %arg0, %c0_i32, %c0_i32_0 : i32, i32, i32
  }
}

</mosaic_0001>

<llo_original>
// kernel: _gab_forward.1
$region0: #{_gab_forward.1}
  #allocation0 [shape = 'u32[]', space=smem, size = 0x4, offset = 0x4, fixed_abs, tag = 'smem constant byte address 0x4 - core index']
  #allocation1 [shape = 'u32[144,128]{1,0:T(1,128)}', space=vmem, size = 0x12000, scoped, tag = 'internal scratch']
  %s0 = inlined_call_operand.vmem [shape: f32[2,32,256], index: 0, kind: input, shape index: {}, may-alias: {0,5}]
  %s1 = inlined_call_operand.vmem [shape: f32[32,8], index: 1, kind: input, shape index: {}]
  %s2 = inlined_call_operand.vmem [shape: f32[1,8], index: 2, kind: input, shape index: {}]
  %s3 = inlined_call_operand.vmem [shape: f32[8,32], index: 3, kind: input, shape index: {}]
  %s4 = inlined_call_operand.vmem [shape: f32[1,32], index: 4, kind: input, shape index: {}]
  %s5 = inlined_call_operand.vmem [shape: f32[2,32,256], index: 5, kind: output, shape index: {}, may-alias: {0,5}]
  %s6 = sld [smem:[#allocation0]]
  $region53: #{_gab_forward.1} parent=0
    _
  %s8 = ssub.s32 1, %s6
  %s9 = scalar_select 0, %s8, %s6
  loop: start=0, step=1, limit=4
  $region2: #{_gab_forward.1} parent=0 // loop_pre_header
    _
  $region3: #{_gab_forward.1} parent=0 // loop_header
    %s11 = sphi 0, %s15
    %p12 = scmp.ge.s32.totalorder %s11, 4
    %s21 = sphi 0, %s23
    %s24 = sphi 0, %s21
    %s25 = sphi 0, %s24
    %s41 = sphi 0, %s25
    %s45 = sphi 0, %s45
    %s47 = sphi 0, %s45
    %s48 = sphi 0, %s47
    %s62 = sphi 0, %s48
    %s66 = sphi 0, %s66
    %s68 = sphi 0, %s66
    %s69 = sphi 0, %s68
    %s83 = sphi 0, %s69
    %s87 = sphi 0, %s87
    %s89 = sphi 0, %s87
    %s90 = sphi 0, %s89
    %s104 = sphi 0, %s90
    %s108 = sphi 0, %s108
    %s110 = sphi 0, %s108
    %s111 = sphi 0, %s110
    %s125 = sphi 0, %s111
    %s131 = sphi 0, %s133
    %s134 = sphi 0, %s131
    %s135 = sphi 0, %s134
    %s151 = sphi 0, %s135
  $region4: #{_gab_forward.1} parent=0 // loop_header_branch
    %14 = sbr.rel (%p12) target = $region8
  $region5: #{_gab_forward.1} parent=0 // loop_body
    %s16 = ssub.s32 %s11, 1
    %s17 = ssub.s32 %s11, 2
    %s18 = sadd.s32 %s11, 1
    %s19 = ssub.s32 %s11, %s18
    %p20 = scmp.eq.s32.totalorder %s19, 0
    %s22 = sadd.s32 %s21, 1
    %s23 = scalar_select %p20, %s21, %s22
    %p26 = pneg %p20
    %p27 = scmp.eq.s32.totalorder %s11, 1
    %p28 = por %p26, %p27
    %p29 = scmp.ne.s32.totalorder %s21, %s24
    %p30 = scmp.eq.s32.totalorder %s11, 0
    %p31 = por %p29, %p30
    %p32 = scmp.ne.s32.totalorder %s21, %s24
    %p33 = scmp.eq.s32.totalorder %s16, 1
    %p34 = por %p32, %p33
    %p35 = scmp.ne.s32.totalorder %s24, %s25
    %p36 = scmp.eq.s32.totalorder %s16, 0
    %p37 = por %p35, %p36
    %p38 = scmp.ne.s32.totalorder %s24, %s25
    %p39 = scmp.eq.s32.totalorder %s17, 1
    %p40 = por %p38, %p39
    %p42 = scmp.ne.s32.totalorder %s25, %s41
    %p43 = scmp.eq.s32.totalorder %s17, 0
    %p44 = por %p42, %p43
    %s46 = sadd.s32 %s45, 1
    %p49 = scmp.eq.s32.totalorder %s11, 1
    %p50 = scmp.ne.s32.totalorder %s45, %s47
    %p51 = scmp.eq.s32.totalorder %s11, 0
    %p52 = por %p50, %p51
    %p53 = scmp.ne.s32.totalorder %s45, %s47
    %p54 = scmp.eq.s32.totalorder %s16, 1
    %p55 = por %p53, %p54
    %p56 = scmp.ne.s32.totalorder %s47, %s48
    %p57 = scmp.eq.s32.totalorder %s16, 0
    %p58 = por %p56, %p57
    %p59 = scmp.ne.s32.totalorder %s47, %s48
    %p60 = scmp.eq.s32.totalorder %s17, 1
    %p61 = por %p59, %p60
    %p63 = scmp.ne.s32.totalorder %s48, %s62
    %p64 = scmp.eq.s32.totalorder %s17, 0
    %p65 = por %p63, %p64
    %s67 = sadd.s32 %s66, 1
    %p70 = scmp.eq.s32.totalorder %s11, 1
    %p71 = scmp.ne.s32.totalorder %s66, %s68
    %p72 = scmp.eq.s32.totalorder %s11, 0
    %p73 = por %p71, %p72
    %p74 = scmp.ne.s32.totalorder %s66, %s68
    %p75 = scmp.eq.s32.totalorder %s16, 1
    %p76 = por %p74, %p75
    %p77 = scmp.ne.s32.totalorder %s68, %s69
    %p78 = scmp.eq.s32.totalorder %s16, 0
    %p79 = por %p77, %p78
    %p80 = scmp.ne.s32.totalorder %s68, %s69
    %p81 = scmp.eq.s32.totalorder %s17, 1
    %p82 = por %p80, %p81
    %p84 = scmp.ne.s32.totalorder %s69, %s83
    %p85 = scmp.eq.s32.totalorder %s17, 0
    %p86 = por %p84, %p85
    %s88 = sadd.s32 %s87, 1
    %p91 = scmp.eq.s32.totalorder %s11, 1
    %p92 = scmp.ne.s32.totalorder %s87, %s89
    %p93 = scmp.eq.s32.totalorder %s11, 0
    %p94 = por %p92, %p93
    %p95 = scmp.ne.s32.totalorder %s87, %s89
    %p96 = scmp.eq.s32.totalorder %s16, 1
    %p97 = por %p95, %p96
    %p98 = scmp.ne.s32.totalorder %s89, %s90
    %p99 = scmp.eq.s32.totalorder %s16, 0
    %p100 = por %p98, %p99
    %p101 = scmp.ne.s32.totalorder %s89, %s90
    %p102 = scmp.eq.s32.totalorder %s17, 1
    %p103 = por %p101, %p102
    %p105 = scmp.ne.s32.totalorder %s90, %s104
    %p106 = scmp.eq.s32.totalorder %s17, 0
    %p107 = por %p105, %p106
    %s109 = sadd.s32 %s108, 1
    %p112 = scmp.eq.s32.totalorder %s11, 1
    %p113 = scmp.ne.s32.totalorder %s108, %s110
    %p114 = scmp.eq.s32.totalorder %s11, 0
    %p115 = por %p113, %p114
    %p116 = scmp.ne.s32.totalorder %s108, %s110
    %p117 = scmp.eq.s32.totalorder %s16, 1
    %p118 = por %p116, %p117
    %p119 = scmp.ne.s32.totalorder %s110, %s111
    %p120 = scmp.eq.s32.totalorder %s16, 0
    %p121 = por %p119, %p120
    %p122 = scmp.ne.s32.totalorder %s110, %s111
    %p123 = scmp.eq.s32.totalorder %s17, 1
    %p124 = por %p122, %p123
    %p126 = scmp.ne.s32.totalorder %s111, %s125
    %p127 = scmp.eq.s32.totalorder %s17, 0
    %p128 = por %p126, %p127
    %s129 = ssub.s32 %s11, %s18
    %p130 = scmp.eq.s32.totalorder %s129, 0
    %s132 = sadd.s32 %s131, 1
    %s133 = scalar_select %p130, %s131, %s132
    %p136 = pneg %p130
    %p137 = scmp.eq.s32.totalorder %s11, 1
    %p138 = por %p136, %p137
    %p139 = scmp.ne.s32.totalorder %s131, %s134
    %p140 = scmp.eq.s32.totalorder %s11, 0
    %p141 = por %p139, %p140
    %p142 = scmp.ne.s32.totalorder %s131, %s134
    %p143 = scmp.eq.s32.totalorder %s16, 1
    %p144 = por %p142, %p143
    %p145 = scmp.ne.s32.totalorder %s134, %s135
    %p146 = scmp.eq.s32.totalorder %s16, 0
    %p147 = por %p145, %p146
    %p148 = scmp.ne.s32.totalorder %s134, %s135
    %p149 = scmp.eq.s32.totalorder %s17, 1
    %p150 = por %p148, %p149
    %p152 = scmp.ne.s32.totalorder %s135, %s151
    %p153 = scmp.eq.s32.totalorder %s17, 0
    %p154 = por %p152, %p153
    %p155 = scmp.le.s32.totalorder 1, %s11
    %p156 = scmp.lt.s32.totalorder %s11, 3
    %p157 = pnand %p155, %p156
    %p158 = pneg %p157
    // Predicated region
    $region9: #{_gab_forward.1} parent=5 // pred_check
      _
    $region10: #{_gab_forward.1} parent=5 // pred_check_branch
      %160 = sbr.rel (%p157) target = $region12
    $region11: #{_gab_forward.1} parent=5 // pred_region
      %s161 = ssub.s32 %s11, 1
      // Predicated region
      $region13: #{_gab_forward.1} parent=11 // pred_check
        %p162 = pneg %p58
      $region14: #{_gab_forward.1} parent=11 // pred_check_branch
        %164 = sbr.rel (%p162) target = $region16
      $region15: #{_gab_forward.1} parent=11 // pred_region
        _
      $region16: #{_gab_forward.1} parent=11 // pred_fallthru
        _
      // Predicated region
      $region17: #{_gab_forward.1} parent=11 // pred_check
        %p165 = pneg %p79
      $region18: #{_gab_forward.1} parent=11 // pred_check_branch
        %167 = sbr.rel (%p165) target = $region20
      $region19: #{_gab_forward.1} parent=11 // pred_region
        _
      $region20: #{_gab_forward.1} parent=11 // pred_fallthru
        _
      // Predicated region
      $region21: #{_gab_forward.1} parent=11 // pred_check
        %p168 = pneg %p100
      $region22: #{_gab_forward.1} parent=11 // pred_check_branch
        %170 = sbr.rel (%p168) target = $region24
      $region23: #{_gab_forward.1} parent=11 // pred_region
        _
      $region24: #{_gab_forward.1} parent=11 // pred_fallthru
        _
      // Predicated region
      $region25: #{_gab_forward.1} parent=11 // pred_check
        %p171 = pneg %p121
      $region26: #{_gab_forward.1} parent=11 // pred_check_branch
        %173 = sbr.rel (%p171) target = $region28
      $region27: #{_gab_forward.1} parent=11 // pred_region
        _
      $region28: #{_gab_forward.1} parent=11 // pred_fallthru
        _
    $region12: #{_gab_forward.1} parent=5 // pred_fallthru
      _
    %p174 = scmp.lt.s32.totalorder %s11, 2
    // Predicated region
    $region29: #{_gab_forward.1} parent=5 // pred_check
      %p175 = pneg %p174
    $region30: #{_gab_forward.1} parent=5 // pred_check_branch
      %177 = sbr.rel (%p175) target = $region32
    $region31: #{_gab_forward.1} parent=5 // pred_region
      // Predicated region
      $region33: #{_gab_forward.1} parent=31 // pred_check
        %p178 = pneg %p31
      $region34: #{_gab_forward.1} parent=31 // pred_check_branch
        %180 = sbr.rel (%p178) target = $region36
      $region35: #{_gab_forward.1} parent=31 // pred_region
        %p181 = scmp.lt.s32.totalorder %s11, 1
        %s182 = scalar_select %p181, %s11, 1
        %s183 = smul.addr %s182, 8
        %s184 = smul.addr %s183, 8
        %s185 = scalar_lea.vmem %s0, %s184
      $region36: #{_gab_forward.1} parent=31 // pred_fallthru
        _
    $region32: #{_gab_forward.1} parent=5 // pred_fallthru
      _
    %p186 = scmp.le.s32.totalorder 1, %s11
    %p187 = scmp.lt.s32.totalorder %s11, 3
    %p188 = pnand %p186, %p187
    %p189 = pneg %p188
    // Predicated region
    $region37: #{_gab_forward.1} parent=5 // pred_check
      _
    $region38: #{_gab_forward.1} parent=5 // pred_check_branch
      %191 = sbr.rel (%p188) target = $region40
    $region39: #{_gab_forward.1} parent=5 // pred_region
      %s192 = ssub.s32 %s11, 1
      %p193 = scmp.lt.s32.totalorder %s16, 1
      %s194 = scalar_select %p193, %s16, 1
      %s195 = smul.addr %s194, 8
      %s196 = smul.addr %s195, 8
      %s197 = scalar_lea.vmem %s0, %s196
      %p198 = pneg %p37
      %p199 = pneg %p34
      %p200 = pneg %p58
      %p201 = pneg %p55
      %p202 = pneg %p79
      %p203 = pneg %p76
      %p204 = pneg %p100
      %p205 = pneg %p97
      %p206 = pneg %p121
      %p207 = pneg %p118
      %p208 = pneg %p147
      %p209 = pneg %p144
      %p210 = scmp.lt.s32.totalorder %s16, 1
      %s211 = scalar_select %p210, %s16, 1
      %s212 = smul.addr %s211, 8
      %s213 = smul.addr %s212, 8
      %s214 = scalar_lea.vmem %s5, %s213
      %p215 = scmp.lt.s32.totalorder %s16, 1
      %s216 = scalar_select %p215, %s16, 1
      %s217 = smul.addr %s216, 8
      %s218 = smul.addr %s217, 8
      %s219 = scalar_lea.vmem %s0, %s218
      %p220 = scmp.lt.s32.totalorder %s16, 1
      %s221 = scalar_select %p220, %s16, 1
      %s222 = smul.addr %s221, 8
      %s223 = smul.addr %s222, 8
      %s224 = scalar_lea.vmem %s5, %s223
      %v225 = vld [vmem:[%s219] sm:$0xff]
      %v226 = vld [vmem:[%s219 + $0x8] sm:$0xff]
      %v227 = vld [vmem:[%s219 + $0x10] sm:$0xff]
      %v228 = vld [vmem:[%s219 + $0x18] sm:$0xff]
      %v229 = vld [vmem:[%s219 + $0x20] sm:$0xff]
      %v230 = vld [vmem:[%s219 + $0x28] sm:$0xff]
      %v231 = vld [vmem:[%s219 + $0x30] sm:$0xff]
      %v232 = vld [vmem:[%s219 + $0x38] sm:$0xff]
      %v233 = vadd.f32 %v225, %v226
      %234 = vadd.xlane.f32.xlu0 %v233
      %v235 = vpop.xlane.xlu0 %234
      %v236 = vadd.f32 %v227, %v228
      %237 = vadd.xlane.f32.xlu0 %v236
      %v238 = vpop.xlane.xlu0 %237
      %v239 = vadd.f32 %v229, %v230
      %240 = vadd.xlane.f32.xlu0 %v239
      %v241 = vpop.xlane.xlu0 %240
      %v242 = vadd.f32 %v231, %v232
      %243 = vadd.xlane.f32.xlu0 %v242
      %v244 = vpop.xlane.xlu0 %243
      %v245 = vmul.f32 %v235, 0.00390625
      %v246 = vmul.f32 %v238, 0.00390625
      %v247 = vmul.f32 %v241, 0.00390625
      %v248 = vmul.f32 %v244, 0.00390625
      %v249 = vld [vmem:[%s1] sm:$0xff]
      %v250 = vld [vmem:[%s1 + $0x8] sm:$0xff]
      %v251 = vld [vmem:[%s1 + $0x10] sm:$0xff]
      %v252 = vld [vmem:[%s1 + $0x18] sm:$0xff]
      %v253 = vld [vmem:[%s2] sm:$0x1]
      %v258 = vlaneseq
      %v259 = vand.u32 %v258, 127
      %v260 = vlaneseq
      %v261 = vshrl.u32 %v260, 7
      %v262 = vsub.s32 %v259, %v261
      %v263 = vrot.slane %v245, %v262
      %v264 = vadd.s32 %v259, 4294967288
      %v265 = vlaneseq
      %v266 = vshrl.u32 %v265, 7
      %v267 = vsub.s32 %v264, %v266
      %v268 = vrot.slane %v246, %v267
      %vm269 = vcmask 130112
      %v270 = vsel %vm269, %v268, %v263
      %v271 = vadd.s32 %v259, 4294967280
      %v272 = vlaneseq
      %v273 = vshrl.u32 %v272, 7
      %v274 = vsub.s32 %v271, %v273
      %v275 = vrot.slane %v247, %v274
      %vm276 = vcmask 195712
      %v277 = vsel %vm276, %v275, %v270
      %v278 = vadd.s32 %v259, 4294967272
      %v279 = vlaneseq
      %v280 = vshrl.u32 %v279, 7
      %v281 = vsub.s32 %v278, %v280
      %v282 = vrot.slane %v248, %v281
      %vm283 = vcmask 261312
      %v284 = vsel %vm283, %v282, %v277
      %vm285 = vcmask 261120
      %v286 = vsel %vm285, %v284, 0
      %288 = vmatprep.subr.mxu0 0.0
      %289 = vmatpush1.msra.mxu0 %v249
      %290 = vmatprep.subr.mxu0 0.0
      %291 = vmatpush1.msra.mxu0 %v250
      %292 = vmatprep.subr.mxu0 0.0
      %293 = vmatpush1.msra.mxu0 %v251
      %294 = vmatprep.subr.mxu0 0.0
      %295 = vmatpush1.msra.mxu0 %v252
      %296 = vmatprep.subr.mxu0 0.0
      %297 = vmatpush1.msra.mxu0 0.0
      %298 = vmatprep.subr.mxu0 0.0
      %299 = vmatpush1.msra.mxu0 0.0
      %300 = vmatprep.subr.mxu0 0.0
      %301 = vmatpush1.msra.mxu0 0.0
      %302 = vmatprep.subr.mxu0 0.0
      %303 = vmatpush1.msra.mxu0 0.0
      %304 = vmatprep.subr.mxu0 0.0
      %305 = vmatpush1.msra.mxu0 0.0
      %306 = vmatprep.subr.mxu0 0.0
      %307 = vmatpush1.msra.mxu0 0.0
      %308 = vmatprep.subr.mxu0 0.0
      %309 = vmatpush1.msra.mxu0 0.0
      %310 = vmatprep.subr.mxu0 0.0
      %311 = vmatpush1.msra.mxu0 0.0
      %312 = vmatprep.subr.mxu0 0.0
      %313 = vmatpush1.msra.mxu0 0.0
      %314 = vmatprep.subr.mxu0 0.0
      %315 = vmatpush1.msra.mxu0 0.0
      %316 = vmatprep.subr.mxu0 0.0
      %317 = vmatpush1.msra.mxu0 0.0
      %318 = vmatprep.subr.mxu0 0.0
      %319 = vmatpush1.msra.mxu0 0.0
      %320 = vmatprep.subr.mxu0 0.0
      %321 = vmatpush1.msra.mxu0 0.0
      %322 = vmatprep.subr.mxu0 0.0
      %323 = vmatpush1.msra.mxu0 0.0
      %324 = vmatprep.subr.mxu0 0.0
      %325 = vmatpush1.msra.mxu0 0.0
      %326 = vmatprep.subr.mxu0 0.0
      %327 = vmatpush1.msra.mxu0 0.0
      %328 = vmatprep.subr.mxu0 0.0
      %329 = vmatpush1.msra.mxu0 0.0
      %330 = vmatprep.subr.mxu0 0.0
      %331 = vmatpush1.msra.mxu0 0.0
      %332 = vmatprep.subr.mxu0 0.0
      %333 = vmatpush1.msra.mxu0 0.0
      %334 = vmatprep.subr.mxu0 0.0
      %335 = vmatpush1.msra.mxu0 0.0
      %336 = vmatprep.subr.mxu0 0.0
      %337 = vmatpush1.msra.mxu0 0.0
      %338 = vmatprep.subr.mxu0 0.0
      %339 = vmatpush1.msra.mxu0 0.0
      %340 = vmatprep.subr.mxu0 0.0
      %341 = vmatpush1.msra.mxu0 0.0
      %342 = vmatprep.subr.mxu0 0.0
      %343 = vmatpush1.msra.mxu0 0.0
      %344 = vmatprep.subr.mxu0 0.0
      %345 = vmatpush1.msra.mxu0 0.0
      %346 = vmatprep.subr.mxu0 0.0
      %347 = vmatpush1.msra.mxu0 0.0
      %348 = vmatprep.subr.mxu0 0.0
      %349 = vmatpush1.msra.mxu0 0.0
      %350 = vmatprep.subr.mxu0 0.0
      %351 = vmatpush1.msra.mxu0 0.0
      %352 = vmatprep.mubr.f32.mxu0 0.0
      %353 = vmatmul.mubr.f32.gmra.mrb[0].mxu0 %v286
      %v354 = vpop.f32.mrb[0].mxu0
      %v355 = vadd.f32 %v253, %v354
      %v356 = vpop.f32.mrb[0].mxu0
      %357 = vdwg.mxu0
      %v358 = vmax.f32 %v355, 0.0
      %v359 = vld [vmem:[%s3] sm:$0xff]
      %v360 = vld [vmem:[%s4] sm:$0x1]
      %vm361 = vcmask 64512
      %v363 = vsel %vm361, %v358, 0
      %365 = vmatprep.subr.mxu0 0.0
      %366 = vmatpush1.msra.mxu0 %v359
      %367 = vmatprep.subr.mxu0 0.0
      %368 = vmatpush1.msra.mxu0 0.0
      %369 = vmatprep.subr.mxu0 0.0
      %370 = vmatpush1.msra.mxu0 0.0
      %371 = vmatprep.subr.mxu0 0.0
      %372 = vmatpush1.msra.mxu0 0.0
      %373 = vmatprep.subr.mxu0 0.0
      %374 = vmatpush1.msra.mxu0 0.0
      %375 = vmatprep.subr.mxu0 0.0
      %376 = vmatpush1.msra.mxu0 0.0
      %377 = vmatprep.subr.mxu0 0.0
      %378 = vmatpush1.msra.mxu0 0.0
      %379 = vmatprep.subr.mxu0 0.0
      %380 = vmatpush1.msra.mxu0 0.0
      %381 = vmatprep.subr.mxu0 0.0
      %382 = vmatpush1.msra.mxu0 0.0
      %383 = vmatprep.subr.mxu0 0.0
      %384 = vmatpush1.msra.mxu0 0.0
      %385 = vmatprep.subr.mxu0 0.0
      %386 = vmatpush1.msra.mxu0 0.0
      %387 = vmatprep.subr.mxu0 0.0
      %388 = vmatpush1.msra.mxu0 0.0
      %389 = vmatprep.subr.mxu0 0.0
      %390 = vmatpush1.msra.mxu0 0.0
      %391 = vmatprep.subr.mxu0 0.0
      %392 = vmatpush1.msra.mxu0 0.0
      %393 = vmatprep.subr.mxu0 0.0
      %394 = vmatpush1.msra.mxu0 0.0
      %395 = vmatprep.subr.mxu0 0.0
      %396 = vmatpush1.msra.mxu0 0.0
      %397 = vmatprep.subr.mxu0 0.0
      %398 = vmatpush1.msra.mxu0 0.0
      %399 = vmatprep.subr.mxu0 0.0
      %400 = vmatpush1.msra.mxu0 0.0
      %401 = vmatprep.subr.mxu0 0.0
      %402 = vmatpush1.msra.mxu0 0.0
      %403 = vmatprep.subr.mxu0 0.0
      %404 = vmatpush1.msra.mxu0 0.0
      %405 = vmatprep.subr.mxu0 0.0
      %406 = vmatpush1.msra.mxu0 0.0
      %407 = vmatprep.subr.mxu0 0.0
      %408 = vmatpush1.msra.mxu0 0.0
      %409 = vmatprep.subr.mxu0 0.0
      %410 = vmatpush1.msra.mxu0 0.0
      %411 = vmatprep.subr.mxu0 0.0
      %412 = vmatpush1.msra.mxu0 0.0
      %413 = vmatprep.subr.mxu0 0.0
      %414 = vmatpush1.msra.mxu0 0.0
      %415 = vmatprep.subr.mxu0 0.0
      %416 = vmatpush1.msra.mxu0 0.0
      %417 = vmatprep.subr.mxu0 0.0
      %418 = vmatpush1.msra.mxu0 0.0
      %419 = vmatprep.subr.mxu0 0.0
      %420 = vmatpush1.msra.mxu0 0.0
      %421 = vmatprep.subr.mxu0 0.0
      %422 = vmatpush1.msra.mxu0 0.0
      %423 = vmatprep.subr.mxu0 0.0
      %424 = vmatpush1.msra.mxu0 0.0
      %425 = vmatprep.subr.mxu0 0.0
      %426 = vmatpush1.msra.mxu0 0.0
      %427 = vmatprep.subr.mxu0 0.0
      %428 = vmatpush1.msra.mxu0 0.0
      %429 = vmatprep.mubr.f32.mxu0 0.0
      %430 = vmatmul.mubr.f32.gmra.mrb[0].mxu0 %v363
      %v431 = vpop.f32.mrb[0].mxu0
      %v432 = vadd.f32 %v360, %v431
      %v433 = vpop.f32.mrb[0].mxu0
      %434 = vdwg.mxu0
      %v435 = vxor.u32 %v432, 2147483648
      %v436 = vmul.f32 %v435, 1.442695
      %v437 = vpow.pop %v436
      %v438 = vadd.f32 %v437, 1.0
      %v439 = vrcp.pop %v438
      %v440 = vmul.f32 1.0, %v439
      %v441 = vlaneseq
      %v442 = vshrl.u32 %v441, 7
      %v443 = vsub.s32 0, %v442
      %v444 = vrot.slane %v440, %v443
      %446 = vbcast.lane.b32.xlu0 %v444, 256
      %v447 = vpop.permute.xlu0 %446
      %s449 = sor.u32 256, 8
      %450 = vbcast.lane.b32.xlu0 %v444, %s449
      %v451 = vpop.permute.xlu0 %450
      %s453 = sor.u32 256, 16
      %454 = vbcast.lane.b32.xlu0 %v444, %s453
      %v455 = vpop.permute.xlu0 %454
      %s457 = sor.u32 256, 24
      %458 = vbcast.lane.b32.xlu0 %v444, %s457
      %v459 = vpop.permute.xlu0 %458
      %v460 = vmul.f32 %v225, %v447
      %v461 = vmul.f32 %v226, %v447
      %v462 = vmul.f32 %v227, %v451
      %v463 = vmul.f32 %v228, %v451
      %v464 = vmul.f32 %v229, %v455
      %v465 = vmul.f32 %v230, %v455
      %v466 = vmul.f32 %v231, %v459
      %v467 = vmul.f32 %v232, %v459
      %468 = vst [vmem:[%s224] sm:$0xff] %v460
      %469 = vst [vmem:[%s224 + $0x8] sm:$0xff] %v461
      %470 = vst [vmem:[%s224 + $0x10] sm:$0xff] %v462
      %471 = vst [vmem:[%s224 + $0x18] sm:$0xff] %v463
      %472 = vst [vmem:[%s224 + $0x20] sm:$0xff] %v464
      %473 = vst [vmem:[%s224 + $0x28] sm:$0xff] %v465
      %474 = vst [vmem:[%s224 + $0x30] sm:$0xff] %v466
      %475 = vst [vmem:[%s224 + $0x38] sm:$0xff] %v467
      %p476 = scmp.lt.s32.totalorder %s16, 1
      %s477 = scalar_select %p476, %s16, 1
      %s478 = smul.addr %s477, 8
      %s479 = smul.addr %s478, 8
      %s480 = scalar_lea.vmem %s5, %s479
      // Predicated region
      $region41: #{_gab_forward.1} parent=39 // pred_check
        %p481 = pneg %p144
      $region42: #{_gab_forward.1} parent=39 // pred_check_branch
        %483 = sbr.rel (%p481) target = $region44
      $region43: #{_gab_forward.1} parent=39 // pred_region
        _
      $region44: #{_gab_forward.1} parent=39 // pred_fallthru
        _
    $region40: #{_gab_forward.1} parent=5 // pred_fallthru
      _
    %p484 = scmp.le.s32.totalorder 2, %s11
    // Predicated region
    $region45: #{_gab_forward.1} parent=5 // pred_check
      %p485 = pneg %p484
    $region46: #{_gab_forward.1} parent=5 // pred_check_branch
      %487 = sbr.rel (%p485) target = $region48
    $region47: #{_gab_forward.1} parent=5 // pred_region
      %s488 = ssub.s32 %s11, 2
      // Predicated region
      $region49: #{_gab_forward.1} parent=47 // pred_check
        %p489 = pneg %p150
      $region50: #{_gab_forward.1} parent=47 // pred_check_branch
        %491 = sbr.rel (%p489) target = $region52
      $region51: #{_gab_forward.1} parent=47 // pred_region
        %p492 = scmp.lt.s32.totalorder %s17, 1
        %s493 = scalar_select %p492, %s17, 1
        %s494 = smul.addr %s493, 8
        %s495 = smul.addr %s494, 8
        %s496 = scalar_lea.vmem %s5, %s495
      $region52: #{_gab_forward.1} parent=47 // pred_fallthru
        _
    $region48: #{_gab_forward.1} parent=5 // pred_fallthru
      _
  $region6: #{_gab_forward.1} parent=0 // loop_footer
    %s15 = sadd.s32 1, %s11
  $region7: #{_gab_forward.1} parent=0 // loop_footer_branch
    %10 = sbr.rel target = $region3
  $region8: #{_gab_forward.1} parent=0 // loop_exit
    _

</llo_original>
